<compile_context>
chip_gen: v7x
topology: tpu7x:2x2x1
jax: 0.10.0
libtpu: 0.0.40
codegen_flags: <defaults>
</compile_context>

<pallas_src>
import jax
import jax.numpy as jnp
from jax.experimental import pallas as pl
from jax.experimental.pallas import tpu as pltpu

NUM_BINS = 256
LANE = 128            # lanes per vreg
SUBLANE = 8           # sublanes per vreg
_TARGET_BLOCK_BYTES = 4 << 20   # ~4 MiB per block (per perf review, v6e/v7x sweet spot)


# ------------------------------- kernel -------------------------------------


def _make_kernel(num_bins, n_sub, block_cols):
    """Elementwise clamp/scale + split-table lane gather over (8, block_cols) tiles."""
    n_chunks = block_cols // LANE
    scale = float(num_bins - 1)

    def kernel(x_ref, lut_ref, o_ref):
        # Hoist the (8,128) sub-tables: one vreg each, read once per grid step.
        tabs = [lut_ref[:, s * LANE:(s + 1) * LANE] for s in range(n_sub)]

        def chunk(j, carry):
            off = pl.multiple_of(j * LANE, LANE)
            x = x_ref[:, pl.ds(off, LANE)].astype(jnp.float32)
            x = jnp.clip(x, 0.0, 1.0)
            idx = (x * scale).astype(jnp.int32)        # x >= 0 -> truncation == floor
            idx = jnp.clip(idx, 0, num_bins - 1)       # guards garbage in padded edge lanes
            lo = idx & (LANE - 1)                      # lane-local index into a sub-table
            val = jnp.take_along_axis(tabs[0], lo, axis=1, mode="promise_in_bounds")
            if n_sub > 1:
                hi = idx >> 7                          # which 128-wide sub-table
                for s in range(1, n_sub):
                    v = jnp.take_along_axis(tabs[s], lo, axis=1,
                                            mode="promise_in_bounds")
                    val = jnp.where(hi == s, v, val)
            o_ref[:, pl.ds(off, LANE)] = val.astype(o_ref.dtype)
            return carry

        jax.lax.fori_loop(0, n_chunks, chunk, 0, unroll=min(8, n_chunks))

    return kernel


# ------------------------------- wrapper ------------------------------------


def _layout(total):
    """(rows, cols, padded_total): lane-dense (8, total/8) slab.

    Only tiny inputs (< 1024 elements) or totals not divisible by 8 pay a pad copy;
    ragged column counts are handled by Pallas' masked edge block instead.
    """
    min_total = SUBLANE * LANE
    if total % SUBLANE == 0 and total >= min_total:
        return SUBLANE, total // SUBLANE, total
    padded = max(min_total, -(-total // min_total) * min_total)
    return SUBLANE, padded // SUBLANE, padded


def _pick_block_cols(cols, in_itemsize, out_itemsize):
    """Lanes per block: ~4 MiB, multiple of 128, >= 2 (ideally even) grid steps."""
    per_col = SUBLANE * max(in_itemsize, out_itemsize)
    target = max(LANE, (_TARGET_BLOCK_BYTES // per_col) // LANE * LANE)
    bc = min(target, max(LANE, (cols // LANE) * LANE))
    # v7x megacore: ensure at least two grid steps whenever the data allows it.
    if pl.cdiv(cols, bc) < 2 and cols > LANE:
        bc = max(LANE, (cols // 2 // LANE) * LANE)
    # Best effort: prefer an even number of grid steps (balanced across 2 TCs).
    nblk = pl.cdiv(cols, bc)
    if nblk > 1 and nblk % 2 == 1:
        cand = max(LANE, pl.cdiv(pl.cdiv(cols, nblk + 1), LANE) * LANE)
        if pl.cdiv(cols, cand) % 2 == 0:
            bc = cand
    return bc


def _vmem_limit_bytes(bc, in_itemsize, out_itemsize, n_sub):
    in_b = SUBLANE * bc * in_itemsize
    out_b = SUBLANE * bc * out_itemsize
    lut_b = SUBLANE * n_sub * LANE * 4
    needed = 2 * (in_b + out_b + lut_b) + (4 << 20)     # double-buffered + scratch slack
    return int(min(max(needed, 16 << 20), 32 << 20))


def mapping_embedding(x, emb_weight, num_bins=NUM_BINS, out_dtype=None):
    """Pallas forward of MappingEmbedding.

    x: any shape / float dtype; emb_weight: (num_bins, 1).
    out_dtype defaults to float32 (matching the PyTorch reference); pass x.dtype
    (e.g. bf16) to halve output HBM traffic.  jit-safe: all shape logic is static.
    """
    orig_shape = x.shape
    total = int(x.size)
    out_dtype = jnp.dtype(jnp.float32) if out_dtype is None else jnp.dtype(out_dtype)

    # Fold bin centers into the table: out = emb[idx]*(idx+0.5)/num_bins = fused[idx].
    k = jnp.arange(num_bins, dtype=jnp.float32)
    fused = emb_weight.reshape(num_bins).astype(jnp.float32) * ((k + 0.5) / num_bins)
    n_sub = pl.cdiv(num_bins, LANE)
    if n_sub * LANE != num_bins:
        fused = jnp.pad(fused, (0, n_sub * LANE - num_bins))
    # Replicate across the 8 sublanes so each sub-table is exactly one vreg.
    lut = jnp.broadcast_to(fused, (SUBLANE, n_sub * LANE))

    rows, cols, padded_total = _layout(total)
    flat = x.reshape(-1)
    if padded_total != total:
        # TODO(synk): rare ragged path (total % 8 != 0 or tiny input) still pays one
        # wrapper-side pad copy; a masked tail call would avoid it.
        flat = jnp.pad(flat, (0, padded_total - total))
    x2d = flat.reshape(rows, cols)

    bc = _pick_block_cols(cols, x2d.dtype.itemsize, out_dtype.itemsize)
    nblk = pl.cdiv(cols, bc)

    out2d = pl.pallas_call(
        _make_kernel(num_bins, n_sub, bc),
        out_shape=jax.ShapeDtypeStruct((rows, cols), out_dtype),
        grid=(nblk,),
        in_specs=[
            pl.BlockSpec((rows, bc), lambda i: (0, i)),
            pl.BlockSpec((SUBLANE, n_sub * LANE), lambda i: (0, 0)),
        ],
        out_specs=pl.BlockSpec((rows, bc), lambda i: (0, i)),
        compiler_params=pltpu.CompilerParams(
            dimension_semantics=("parallel",),
            vmem_limit_bytes=_vmem_limit_bytes(
                bc, x2d.dtype.itemsize, out_dtype.itemsize, n_sub),
        ),
    )(x2d, lut)

    out = out2d.reshape(-1)
    if padded_total != total:
        out = out[:total]
    return out.reshape(orig_shape)


def mapping_embedding_ref(x, emb_weight, num_bins=NUM_BINS):
    """Pure-JAX reference mirroring the PyTorch forward exactly."""
    xc = jnp.clip(x.astype(jnp.float32), 0.0, 1.0)
    idx = jnp.floor(xc * (num_bins - 1)).astype(jnp.int32)
    one_hot = emb_weight.astype(jnp.float32)[idx]               # (..., 1)
    centers = (idx.astype(jnp.float32) + 0.5) / num_bins
    return (one_hot * centers[..., None]).sum(-1)


if __name__ == "__main__":
    key = jax.random.PRNGKey(0)
    k_x, k_w = jax.random.split(key)

    # Small NCHW input consistent with the module's image-like usage;
    # range [-0.2, 1.2] exercises the clamp.
    x = jax.random.uniform(k_x, (2, 4, 16, 16), dtype=jnp.float32,
                           minval=-0.2, maxval=1.2)
    fwd = jax.jit(mapping_embedding)          # wrapper is jit-safe (no host sync inside)

    # (a) module init: nn.init.constant_(embedding.weight, 1.0)
    w_ones = jnp.ones((NUM_BINS, 1), dtype=jnp.float32)
    out = jax.block_until_ready(fwd(x, w_ones))
    ref = mapping_embedding_ref(x, w_ones)
    assert out.shape == x.shape and out.dtype == jnp.float32
    assert jnp.allclose(out, ref, atol=1e-6), "mismatch vs reference (const weights)"

    # (b) arbitrary (trained) weights exercise the gathered values directly.
    w_rand = jax.random.normal(k_w, (NUM_BINS, 1), dtype=jnp.float32)
    out2 = jax.block_until_ready(fwd(x, w_rand))
    ref2 = mapping_embedding_ref(x, w_rand)
    assert jnp.allclose(out2, ref2, atol=1e-6), "mismatch vs reference (random weights)"

    # (c) bf16 activations with a ragged element count (exercises pad/edge handling).
    x3 = jax.random.uniform(k_x, (3, 5, 7), dtype=jnp.bfloat16,
                            minval=-0.2, maxval=1.2)
    out3 = jax.block_until_ready(mapping_embedding(x3, w_rand))
    ref3 = mapping_embedding_ref(x3, w_rand)
    assert out3.shape == x3.shape
    assert jnp.allclose(out3, ref3, atol=1e-6), "mismatch vs reference (bf16/ragged)"

    print("KERNEL_OK")
</pallas_src>

<mosaic_0001>
module attributes {stable_mosaic.version = 11 : i64} {
  func.func @kernel(%arg0: i32, %arg1: memref<8x128xf32, #tpu.memory_space<vmem>>, %arg2: memref<8x256xf32, #tpu.memory_space<vmem>>, %arg3: memref<8x128xf32, #tpu.memory_space<vmem>>) attributes {dimension_semantics = [#tpu.dimension_semantics<parallel>], iteration_bounds = array<i64: 2>, scalar_prefetch = 0 : i64, scratch_operands = 0 : i64, tpu.core_type = #tpu.core_type<tc>, window_params = [{transform_indices = @transform_0, window_bounds = array<i64: 8, 128>}, {pipeline_mode = #tpu.pipeline_mode<synchronous>, transform_indices = @transform_1, window_bounds = array<i64: 8, 256>}, {transform_indices = @transform_2, window_bounds = array<i64: 8, 128>}]} {
    %c0 = arith.constant 0 : index
    %c0_0 = arith.constant 0 : index
    %0 = vector.load %arg2[%c0, %c0_0] : memref<8x256xf32, #tpu.memory_space<vmem>>, vector<8x128xf32>
    %c0_1 = arith.constant 0 : index
    %c128 = arith.constant 128 : index
    %1 = vector.load %arg2[%c0_1, %c128] : memref<8x256xf32, #tpu.memory_space<vmem>>, vector<8x128xf32>
    %c0_i32 = arith.constant 0 : i32
    %c128_i32 = arith.constant 128 : i32
    %2 = arith.muli %c0_i32, %c128_i32 : i32
    %3 = tpu.assume_multiple %2, 128 : i32
    %c0_2 = arith.constant 0 : index
    %4 = arith.index_cast %3 : i32 to index
    %5 = vector.load %arg1[%c0_2, %4] : memref<8x128xf32, #tpu.memory_space<vmem>>, vector<8x128xf32>
    %cst = arith.constant 0.000000e+00 : f32
    %cst_3 = arith.constant 1.000000e+00 : f32
    %6 = vector.broadcast %cst : f32 to vector<8x128xf32>
    %7 = arith.maximumf %6, %5 : vector<8x128xf32>
    %8 = vector.broadcast %cst_3 : f32 to vector<8x128xf32>
    %9 = arith.minimumf %8, %7 : vector<8x128xf32>
    %cst_4 = arith.constant 2.550000e+02 : f32
    %10 = vector.broadcast %cst_4 : f32 to vector<8x128xf32>
    %11 = arith.mulf %9, %10 : vector<8x128xf32>
    %12 = arith.fptosi %11 : vector<8x128xf32> to vector<8x128xi32>
    %c0_i32_5 = arith.constant 0 : i32
    %c255_i32 = arith.constant 255 : i32
    %13 = vector.broadcast %c0_i32_5 : i32 to vector<8x128xi32>
    %14 = arith.maxsi %13, %12 : vector<8x128xi32>
    %15 = vector.broadcast %c255_i32 : i32 to vector<8x128xi32>
    %16 = arith.minsi %15, %14 : vector<8x128xi32>
    %c127_i32 = arith.constant 127 : i32
    %17 = vector.broadcast %c127_i32 : i32 to vector<8x128xi32>
    %18 = arith.andi %16, %17 : vector<8x128xi32>
    %19 = vector.shape_cast %18 : vector<8x128xi32> to vector<8x128x1xi32>
    %20 = vector.shape_cast %19 : vector<8x128x1xi32> to vector<8x128xi32>
    %21 = tpu.dynamic_gather %0[%20] in [1] : vector<8x128xf32>, vector<8x128xi32> -> vector<8x128xf32>
    %c7_i32 = arith.constant 7 : i32
    %22 = vector.broadcast %c7_i32 : i32 to vector<8x128xi32>
    %23 = arith.shrsi %16, %22 : vector<8x128xi32>
    %24 = vector.shape_cast %18 : vector<8x128xi32> to vector<8x128x1xi32>
    %25 = vector.shape_cast %24 : vector<8x128x1xi32> to vector<8x128xi32>
    %26 = tpu.dynamic_gather %1[%25] in [1] : vector<8x128xf32>, vector<8x128xi32> -> vector<8x128xf32>
    %c1_i32 = arith.constant 1 : i32
    %27 = vector.broadcast %c1_i32 : i32 to vector<8x128xi32>
    %28 = arith.cmpi eq, %23, %27 : vector<8x128xi32>
    %29 = arith.select %28, %26, %21 : vector<8x128xi1>, vector<8x128xf32>
    %c0_6 = arith.constant 0 : index
    %30 = arith.index_cast %3 : i32 to index
    %31 = vector.load %arg3[%c0_6, %30] : memref<8x128xf32, #tpu.memory_space<vmem>>, vector<8x128xf32>
    tpu.vector_store %arg3[%c0_6, %30], %29 {strides = array<i32>} : memref<8x128xf32, #tpu.memory_space<vmem>>, vector<8x128xf32>,
    %c1_i32_7 = arith.constant 1 : i32
    return
  }
  func.func @transform_0(%arg0: i32) -> (i32, i32) {
    %c0_i32 = arith.constant 0 : i32
    %c0_i32_0 = arith.constant 0 : i32
    return %c0_i32, %arg0 : i32, i32
  }
  func.func @transform_1(%arg0: i32) -> (i32, i32) {
    %c0_i32 = arith.constant 0 : i32
    %c0_i32_0 = arith.constant 0 : i32
    %c0_i32_1 = arith.constant 0 : i32
    return %c0_i32, %c0_i32_0 : i32, i32
  }
  func.func @transform_2(%arg0: i32) -> (i32, i32) {
    %c0_i32 = arith.constant 0 : i32
    %c0_i32_0 = arith.constant 0 : i32
    return %c0_i32, %arg0 : i32, i32
  }
}

</mosaic_0001>

<llo_original>
// kernel: mapping_embedding.1
$region0: #{mapping_embedding.1}
  #allocation0 [shape = 'u32[]', space=smem, size = 0x4, offset = 0x4, fixed_abs, tag = 'smem constant byte address 0x4 - core index']
  #allocation1 [shape = 'u32[144,128]{1,0:T(1,128)}', space=vmem, size = 0x12000, scoped, tag = 'internal scratch']
  %s0 = inlined_call_operand.vmem [shape: f32[8,256], index: 0, kind: input, shape index: {}]
  %s1 = inlined_call_operand.vmem [shape: f32[8,256], index: 1, kind: input, shape index: {}]
  %s2 = inlined_call_operand.vmem [shape: f32[8,256], index: 2, kind: output, shape index: {}]
  %s3 = sld [smem:[#allocation0]]
  $region41: #{mapping_embedding.1} parent=0
    _
  %s5 = ssub.s32 1, %s3
  %s6 = scalar_select 0, %s5, %s3
  loop: start=0, step=1, limit=4
  $region2: #{mapping_embedding.1} parent=0 // loop_pre_header
    _
  $region3: #{mapping_embedding.1} parent=0 // loop_header
    %s8 = sphi 0, %s12
    %p9 = scmp.ge.s32.totalorder %s8, 4
    %s18 = sphi 0, %s20
    %s21 = sphi 0, %s18
    %s22 = sphi 0, %s21
    %s38 = sphi 0, %s22
    %s42 = sphi 0, %s42
    %s44 = sphi 0, %s42
    %s45 = sphi 0, %s44
    %s59 = sphi 0, %s45
    %s65 = sphi 0, %s67
    %s68 = sphi 0, %s65
    %s69 = sphi 0, %s68
    %s85 = sphi 0, %s69
  $region4: #{mapping_embedding.1} parent=0 // loop_header_branch
    %11 = sbr.rel (%p9) target = $region8
  $region5: #{mapping_embedding.1} parent=0 // loop_body
    %s13 = ssub.s32 %s8, 1
    %s14 = ssub.s32 %s8, 2
    %s15 = sadd.s32 %s8, 1
    %s16 = ssub.s32 %s8, %s15
    %p17 = scmp.eq.s32.totalorder %s16, 0
    %s19 = sadd.s32 %s18, 1
    %s20 = scalar_select %p17, %s18, %s19
    %p23 = pneg %p17
    %p24 = scmp.eq.s32.totalorder %s8, 1
    %p25 = por %p23, %p24
    %p26 = scmp.ne.s32.totalorder %s18, %s21
    %p27 = scmp.eq.s32.totalorder %s8, 0
    %p28 = por %p26, %p27
    %p29 = scmp.ne.s32.totalorder %s18, %s21
    %p30 = scmp.eq.s32.totalorder %s13, 1
    %p31 = por %p29, %p30
    %p32 = scmp.ne.s32.totalorder %s21, %s22
    %p33 = scmp.eq.s32.totalorder %s13, 0
    %p34 = por %p32, %p33
    %p35 = scmp.ne.s32.totalorder %s21, %s22
    %p36 = scmp.eq.s32.totalorder %s14, 1
    %p37 = por %p35, %p36
    %p39 = scmp.ne.s32.totalorder %s22, %s38
    %p40 = scmp.eq.s32.totalorder %s14, 0
    %p41 = por %p39, %p40
    %s43 = sadd.s32 %s42, 1
    %p46 = scmp.eq.s32.totalorder %s8, 1
    %p47 = scmp.ne.s32.totalorder %s42, %s44
    %p48 = scmp.eq.s32.totalorder %s8, 0
    %p49 = por %p47, %p48
    %p50 = scmp.ne.s32.totalorder %s42, %s44
    %p51 = scmp.eq.s32.totalorder %s13, 1
    %p52 = por %p50, %p51
    %p53 = scmp.ne.s32.totalorder %s44, %s45
    %p54 = scmp.eq.s32.totalorder %s13, 0
    %p55 = por %p53, %p54
    %p56 = scmp.ne.s32.totalorder %s44, %s45
    %p57 = scmp.eq.s32.totalorder %s14, 1
    %p58 = por %p56, %p57
    %p60 = scmp.ne.s32.totalorder %s45, %s59
    %p61 = scmp.eq.s32.totalorder %s14, 0
    %p62 = por %p60, %p61
    %s63 = ssub.s32 %s8, %s15
    %p64 = scmp.eq.s32.totalorder %s63, 0
    %s66 = sadd.s32 %s65, 1
    %s67 = scalar_select %p64, %s65, %s66
    %p70 = pneg %p64
    %p71 = scmp.eq.s32.totalorder %s8, 1
    %p72 = por %p70, %p71
    %p73 = scmp.ne.s32.totalorder %s65, %s68
    %p74 = scmp.eq.s32.totalorder %s8, 0
    %p75 = por %p73, %p74
    %p76 = scmp.ne.s32.totalorder %s65, %s68
    %p77 = scmp.eq.s32.totalorder %s13, 1
    %p78 = por %p76, %p77
    %p79 = scmp.ne.s32.totalorder %s68, %s69
    %p80 = scmp.eq.s32.totalorder %s13, 0
    %p81 = por %p79, %p80
    %p82 = scmp.ne.s32.totalorder %s68, %s69
    %p83 = scmp.eq.s32.totalorder %s14, 1
    %p84 = por %p82, %p83
    %p86 = scmp.ne.s32.totalorder %s69, %s85
    %p87 = scmp.eq.s32.totalorder %s14, 0
    %p88 = por %p86, %p87
    %p89 = scmp.le.s32.totalorder 1, %s8
    %p90 = scmp.lt.s32.totalorder %s8, 3
    %p91 = pnand %p89, %p90
    %p92 = pneg %p91
    // Predicated region
    $region9: #{mapping_embedding.1} parent=5 // pred_check
      _
    $region10: #{mapping_embedding.1} parent=5 // pred_check_branch
      %94 = sbr.rel (%p91) target = $region12
    $region11: #{mapping_embedding.1} parent=5 // pred_region
      %s95 = ssub.s32 %s8, 1
      // Predicated region
      $region13: #{mapping_embedding.1} parent=11 // pred_check
        %p96 = pneg %p55
      $region14: #{mapping_embedding.1} parent=11 // pred_check_branch
        %98 = sbr.rel (%p96) target = $region16
      $region15: #{mapping_embedding.1} parent=11 // pred_region
        _
      $region16: #{mapping_embedding.1} parent=11 // pred_fallthru
        _
    $region12: #{mapping_embedding.1} parent=5 // pred_fallthru
      _
    %p99 = scmp.lt.s32.totalorder %s8, 2
    // Predicated region
    $region17: #{mapping_embedding.1} parent=5 // pred_check
      %p100 = pneg %p99
    $region18: #{mapping_embedding.1} parent=5 // pred_check_branch
      %102 = sbr.rel (%p100) target = $region20
    $region19: #{mapping_embedding.1} parent=5 // pred_region
      // Predicated region
      $region21: #{mapping_embedding.1} parent=19 // pred_check
        %p103 = pneg %p28
      $region22: #{mapping_embedding.1} parent=19 // pred_check_branch
        %105 = sbr.rel (%p103) target = $region24
      $region23: #{mapping_embedding.1} parent=19 // pred_region
        %p106 = scmp.lt.s32.totalorder %s8, 1
        %s107 = scalar_select %p106, %s8, 1
        %s108 = smul.addr %s107, 8
        %s109 = scalar_lea.vmem %s0, %s108
      $region24: #{mapping_embedding.1} parent=19 // pred_fallthru
        _
    $region20: #{mapping_embedding.1} parent=5 // pred_fallthru
      _
    %p110 = scmp.le.s32.totalorder 1, %s8
    %p111 = scmp.lt.s32.totalorder %s8, 3
    %p112 = pnand %p110, %p111
    %p113 = pneg %p112
    // Predicated region
    $region25: #{mapping_embedding.1} parent=5 // pred_check
      _
    $region26: #{mapping_embedding.1} parent=5 // pred_check_branch
      %115 = sbr.rel (%p112) target = $region28
    $region27: #{mapping_embedding.1} parent=5 // pred_region
      %s116 = ssub.s32 %s8, 1
      %p117 = scmp.lt.s32.totalorder %s13, 1
      %s118 = scalar_select %p117, %s13, 1
      %s119 = smul.addr %s118, 8
      %s120 = scalar_lea.vmem %s0, %s119
      %p121 = pneg %p34
      %p122 = pneg %p31
      %p123 = pneg %p55
      %p124 = pneg %p52
      %p125 = pneg %p81
      %p126 = pneg %p78
      %p127 = scmp.lt.s32.totalorder %s13, 1
      %s128 = scalar_select %p127, %s13, 1
      %s129 = smul.addr %s128, 8
      %s130 = scalar_lea.vmem %s2, %s129
      %p131 = scmp.lt.s32.totalorder %s13, 1
      %s132 = scalar_select %p131, %s13, 1
      %s133 = smul.addr %s132, 8
      %s134 = scalar_lea.vmem %s0, %s133
      %p135 = scmp.lt.s32.totalorder %s13, 1
      %s136 = scalar_select %p135, %s13, 1
      %s137 = smul.addr %s136, 8
      %s138 = scalar_lea.vmem %s2, %s137
      %v139 = vld [vmem:[%s1] sm:$0xff]
      %v140 = vld [vmem:[%s1 + $0x8] sm:$0xff]
      %v141 = vld [vmem:[%s134] sm:$0xff]
      %v142 = vmax.f32 %v141, 0.0
      %v143 = vmin.f32 %v142, 1.0
      %v144 = vmul.f32 %v143, 255.0
      %v145 = vcvt.f32.s32.to.zero.pseudo %v144
      %vm146 = vcmp.gt.s32.totalorder %v145, 0
      %v147 = vsel %vm146, %v145, 0
      %vm148 = vcmp.lt.s32.totalorder %v147, 255
      %v149 = vsel %vm148, %v147, 255
      %v150 = vand.u32 %v149, 127
      %151 = vset.pattern.permute.xlu0 %v150
      %152 = vperm.xlu0 %151, %v139
      %v153 = vpop.permute.xlu0 %152
      %v154 = vshra.s32 %v149, 7
      %155 = vset.pattern.permute.xlu0 %v150
      %156 = vperm.xlu0 %155, %v140
      %v157 = vpop.permute.xlu0 %156
      %vm158 = vcmp.eq.s32.totalorder %v154, 1
      %v159 = vsel %vm158, %v157, %v153
      %160 = vst [vmem:[%s138] sm:$0xff] %v159
      %p161 = scmp.lt.s32.totalorder %s13, 1
      %s162 = scalar_select %p161, %s13, 1
      %s163 = smul.addr %s162, 8
      %s164 = scalar_lea.vmem %s2, %s163
      // Predicated region
      $region29: #{mapping_embedding.1} parent=27 // pred_check
        %p165 = pneg %p78
      $region30: #{mapping_embedding.1} parent=27 // pred_check_branch
        %167 = sbr.rel (%p165) target = $region32
      $region31: #{mapping_embedding.1} parent=27 // pred_region
        _
      $region32: #{mapping_embedding.1} parent=27 // pred_fallthru
        _
    $region28: #{mapping_embedding.1} parent=5 // pred_fallthru
      _
    %p168 = scmp.le.s32.totalorder 2, %s8
    // Predicated region
    $region33: #{mapping_embedding.1} parent=5 // pred_check
      %p169 = pneg %p168
    $region34: #{mapping_embedding.1} parent=5 // pred_check_branch
      %171 = sbr.rel (%p169) target = $region36
    $region35: #{mapping_embedding.1} parent=5 // pred_region
      %s172 = ssub.s32 %s8, 2
      // Predicated region
      $region37: #{mapping_embedding.1} parent=35 // pred_check
        %p173 = pneg %p84
      $region38: #{mapping_embedding.1} parent=35 // pred_check_branch
        %175 = sbr.rel (%p173) target = $region40
      $region39: #{mapping_embedding.1} parent=35 // pred_region
        %p176 = scmp.lt.s32.totalorder %s14, 1
        %s177 = scalar_select %p176, %s14, 1
        %s178 = smul.addr %s177, 8
        %s179 = scalar_lea.vmem %s2, %s178
      $region40: #{mapping_embedding.1} parent=35 // pred_fallthru
        _
    $region36: #{mapping_embedding.1} parent=5 // pred_fallthru
      _
  $region6: #{mapping_embedding.1} parent=0 // loop_footer
    %s12 = sadd.s32 1, %s8
  $region7: #{mapping_embedding.1} parent=0 // loop_footer_branch
    %7 = sbr.rel target = $region3
  $region8: #{mapping_embedding.1} parent=0 // loop_exit
    _

</llo_original>
